<compile_context>
chip_gen: v6e
topology: v6e:2x2x1
jax: 0.10.0
libtpu: 0.0.40
codegen_flags: <defaults>
</compile_context>

<pallas_src>
import jax
import jax.numpy as jnp
from jax.experimental import pallas as pl
from jax.experimental.pallas import tpu as pltpu


def _round_up(n, m):
    return ((n + m - 1) // m) * m


def _pad2d(a, rows, cols, dtype):
    """Cast + zero-pad a 2-D array; skips the pad copy when already aligned."""
    r, c = a.shape
    a = a.astype(dtype)
    if r == rows and c == cols:
        return a
    return jnp.zeros((rows, cols), dtype).at[:r, :c].set(a)


# ---------------------------------------------------------------------------
# Kernels
# ---------------------------------------------------------------------------
def _make_fused_kernel(d_out_pad):
    """Single-block fast path: projection + softmax + context in one kernel."""
    def kernel(x_ref, w_ref, bias_ref, o_ref):
        qkv = jnp.dot(x_ref[...], w_ref[...], preferred_element_type=jnp.float32)
        q = qkv[:, :d_out_pad]                 # scale already folded into Wq
        k = qkv[:, d_out_pad:2 * d_out_pad]
        v = qkv[:, 2 * d_out_pad:]
        s = jax.lax.dot_general(               # Q @ K^T, no materialized transpose
            q, k, dimension_numbers=(((1,), (1,)), ((), ())),
            preferred_element_type=jnp.float32)
        s = s + bias_ref[...]                  # key-padding bias (0 / -1e30)
        m = jnp.max(s, axis=-1, keepdims=True)
        p = jnp.exp(s - m)
        l = jnp.sum(p, axis=-1, keepdims=True)
        out = jnp.dot(p, v, preferred_element_type=jnp.float32)
        o_ref[...] = (out / l).astype(o_ref.dtype)
    return kernel


def _make_proj_kernel(d_out_pad):
    """Q/K/V projection: one fused matmul per row-tile, done once per sequence."""
    def kernel(x_ref, w_ref, q_ref, k_ref, v_ref):
        qkv = jnp.dot(x_ref[...], w_ref[...], preferred_element_type=jnp.float32)
        q_ref[...] = qkv[:, :d_out_pad].astype(q_ref.dtype)
        k_ref[...] = qkv[:, d_out_pad:2 * d_out_pad].astype(k_ref.dtype)
        v_ref[...] = qkv[:, 2 * d_out_pad:].astype(v_ref.dtype)
    return kernel


def _flash_kernel(q_ref, k_ref, v_ref, bias_ref, o_ref, m_ref, l_ref):
    """Flash-style online softmax; accumulates directly into the resident o_ref."""
    ki = pl.program_id(1)

    @pl.when(ki == 0)
    def _init():
        m_ref[...] = jnp.full(m_ref.shape, -jnp.inf, jnp.float32)
        l_ref[...] = jnp.zeros(l_ref.shape, jnp.float32)
        o_ref[...] = jnp.zeros(o_ref.shape, o_ref.dtype)

    # scores = Q @ K^T (bf16 operands, f32 accumulate), no materialized transpose.
    s = jax.lax.dot_general(
        q_ref[...], k_ref[...], dimension_numbers=(((1,), (1,)), ((), ())),
        preferred_element_type=jnp.float32)
    s = s + bias_ref[...]                       # additive key-padding bias

    # Online (streaming) softmax update, all statistics in f32.
    m_prev = m_ref[...]
    m_new = jnp.maximum(m_prev, jnp.max(s, axis=-1, keepdims=True))
    alpha = jnp.exp(m_prev - m_new)
    p = jnp.exp(s - m_new)
    l_ref[...] = alpha * l_ref[...] + jnp.sum(p, axis=-1, keepdims=True)
    o_ref[...] = alpha * o_ref[...] + jnp.dot(
        p.astype(v_ref.dtype), v_ref[...], preferred_element_type=jnp.float32)
    m_ref[...] = m_new

    @pl.when(ki == pl.num_programs(1) - 1)
    def _finalize():
        o_ref[...] = o_ref[...] * pl.reciprocal(l_ref[...], approx=True)


# ---------------------------------------------------------------------------
# Wrapper
# ---------------------------------------------------------------------------
def self_attention_v1(x, w_query, w_key, w_value):
    """Pallas TPU forward pass matching the PyTorch SelfAttention_v1 module."""
    seq, d_in = x.shape
    d_out = w_query.shape[1]

    LANE, SUBLANE = 128, 8
    d_in_pad = _round_up(max(d_in, LANE), LANE)
    d_out_pad = _round_up(max(d_out, LANE), LANE)

    # Tile selection: 256 for long sequences (big MXUs, fewer grid steps) while
    # keeping >= 4 Q blocks for TC sharding; otherwise 128; tiny sequences use
    # a single full block (fast path).
    s8 = _round_up(seq, SUBLANE)
    if s8 >= 1024:
        tile = 256
    elif s8 >= 128:
        tile = 128
    else:
        tile = s8
    seq_pad = _round_up(seq, tile)
    single_block = (seq_pad == tile)

    # bf16 MXU operands on the flash path; full f32 on the tiny fast path.
    op_dtype = jnp.float32 if single_block else jnp.bfloat16
    f32 = jnp.float32
    scale = 1.0 / (float(d_out) ** 0.5)

    # Inputs: x padded lane-dense; weights concatenated as [Wq*scale | Wk | Wv].
    x_p = _pad2d(x.astype(f32), seq_pad, d_in_pad, op_dtype)
    w_cat = jnp.concatenate([
        _pad2d(w_query.astype(f32) * scale, d_in_pad, d_out_pad, op_dtype),
        _pad2d(w_key.astype(f32), d_in_pad, d_out_pad, op_dtype),
        _pad2d(w_value.astype(f32), d_in_pad, d_out_pad, op_dtype),
    ], axis=1)

    # Additive key-padding bias row: 0 for valid keys, -1e30 for padded keys.
    if seq_pad == seq:
        bias = jnp.zeros((1, seq_pad), f32)
    else:
        kidx = jax.lax.broadcasted_iota(jnp.int32, (1, seq_pad), 1)
        bias = jnp.where(kidx < seq, 0.0, -1e30).astype(f32)

    if single_block:
        # Everything fits in one block: one fused kernel, no online softmax.
        out_padded = pl.pallas_call(
            _make_fused_kernel(d_out_pad),
            out_shape=jax.ShapeDtypeStruct((seq_pad, d_out_pad), f32),
        )(x_p, w_cat, bias)
    else:
        n_blocks = seq_pad // tile

        # Stage 1: Q/K/V projection, executed once per sequence (not per ki).
        q, k, v = pl.pallas_call(
            _make_proj_kernel(d_out_pad),
            out_shape=(jax.ShapeDtypeStruct((seq_pad, d_out_pad), op_dtype),) * 3,
            grid=(n_blocks,),
            in_specs=[
                pl.BlockSpec((tile, d_in_pad), lambda i: (i, 0)),
                pl.BlockSpec((d_in_pad, 3 * d_out_pad), lambda i: (0, 0)),
            ],
            out_specs=[pl.BlockSpec((tile, d_out_pad), lambda i: (i, 0))] * 3,
            compiler_params=pltpu.CompilerParams(
                dimension_semantics=("parallel",)),
        )(x_p, w_cat)

        # Stage 2: flash attention over (q_blocks, kv_blocks).
        out_padded = pl.pallas_call(
            _flash_kernel,
            out_shape=jax.ShapeDtypeStruct((seq_pad, d_out_pad), f32),
            grid=(n_blocks, n_blocks),
            in_specs=[
                pl.BlockSpec((tile, d_out_pad), lambda qi, ki: (qi, 0)),  # Q
                pl.BlockSpec((tile, d_out_pad), lambda qi, ki: (ki, 0)),  # K
                pl.BlockSpec((tile, d_out_pad), lambda qi, ki: (ki, 0)),  # V
                pl.BlockSpec((1, tile), lambda qi, ki: (0, ki)),          # bias
            ],
            out_specs=pl.BlockSpec((tile, d_out_pad), lambda qi, ki: (qi, 0)),
            scratch_shapes=[
                pltpu.VMEM((tile, 1), jnp.float32),   # running max m
                pltpu.VMEM((tile, 1), jnp.float32),   # running denom l
            ],
            compiler_params=pltpu.CompilerParams(
                dimension_semantics=("parallel", "arbitrary")),
        )(q, k, v, bias)

    return out_padded[:seq, :d_out]


def self_attention_ref(x, w_query, w_key, w_value):
    keys = x @ w_key
    queries = x @ w_query
    values = x @ w_value
    attn_scores = queries @ keys.T
    attn_weights = jax.nn.softmax(attn_scores / keys.shape[-1] ** 0.5, axis=-1)
    return attn_weights @ values


if __name__ == "__main__":
    key = jax.random.PRNGKey(0)
    keys = jax.random.split(key, 8)

    # --- Test 1: module shapes from the exercise (d_out = 1), fast path (f32).
    seq, d_in, d_out = 8, 32, 1
    x = jax.random.uniform(keys[0], (seq, d_in), dtype=jnp.float32)
    # nn.Parameter(torch.rand(d_in, d_out)) -> uniform [0, 1)
    w_query = jax.random.uniform(keys[1], (d_in, d_out), dtype=jnp.float32)
    w_key = jax.random.uniform(keys[2], (d_in, d_out), dtype=jnp.float32)
    w_value = jax.random.uniform(keys[3], (d_in, d_out), dtype=jnp.float32)

    out = self_attention_v1(x, w_query, w_key, w_value)
    jax.block_until_ready(out)
    ref = self_attention_ref(x, w_query, w_key, w_value)
    assert out.shape == (seq, d_out)
    assert jnp.allclose(out, ref, atol=1e-4, rtol=1e-4), "fast-path mismatch"

    # --- Test 2: multi-block flash path (grid 3x3, masked key padding, bf16 MXU).
    seq2, d_in2, d_out2 = 300, 48, 40
    x2 = jax.random.uniform(keys[4], (seq2, d_in2), dtype=jnp.float32)
    wq2 = jax.random.uniform(keys[5], (d_in2, d_out2), dtype=jnp.float32) * 0.05
    wk2 = jax.random.uniform(keys[6], (d_in2, d_out2), dtype=jnp.float32) * 0.05
    wv2 = jax.random.uniform(keys[7], (d_in2, d_out2), dtype=jnp.float32) * 0.05

    out2 = self_attention_v1(x2, wq2, wk2, wv2)
    jax.block_until_ready(out2)
    ref2 = self_attention_ref(x2, wq2, wk2, wv2)
    assert out2.shape == (seq2, d_out2)
    # bf16 MXU operands + approx reciprocal -> looser tolerance on this path.
    assert jnp.allclose(out2, ref2, atol=3e-2, rtol=3e-2), "flash-path mismatch"

    print("KERNEL_OK")
</pallas_src>

<mosaic_0001>
module attributes {stable_mosaic.version = 11 : i64} {
  func.func @kernel(%arg0: memref<8x128xf32, #tpu.memory_space<vmem>>, %arg1: memref<128x384xf32, #tpu.memory_space<vmem>>, %arg2: memref<1x8xf32, #tpu.memory_space<vmem>>, %arg3: memref<8x128xf32, #tpu.memory_space<vmem>>) attributes {dimension_semantics = [], scalar_prefetch = 0 : i64, scratch_operands = 0 : i64, tpu.core_type = #tpu.core_type<tc>} {
    %c0 = arith.constant 0 : index
    %c0_0 = arith.constant 0 : index
    %0 = vector.load %arg0[%c0, %c0_0] : memref<8x128xf32, #tpu.memory_space<vmem>>, vector<8x128xf32>
    %c0_1 = arith.constant 0 : index
    %c0_2 = arith.constant 0 : index
    %1 = vector.load %arg1[%c0_1, %c0_2] : memref<128x384xf32, #tpu.memory_space<vmem>>, vector<128x384xf32>
    %cst = arith.constant dense<0.000000e+00> : vector<8x384xf32>
    %2 = tpu.matmul %0, %1, %cst {dimension_numbers = #tpu.dot_dimension_numbers<[1], [0], [0], [1], [0, 0, 1, 1], [], []>} : vector<8x128xf32>, vector<128x384xf32>, vector<8x384xf32> -> vector<8x384xf32>
    %3 = vector.extract_strided_slice %2 {offsets = [0, 0], sizes = [8, 128], strides = [1, 1]} : vector<8x384xf32> to vector<8x128xf32>
    %4 = vector.extract_strided_slice %2 {offsets = [0, 128], sizes = [8, 128], strides = [1, 1]} : vector<8x384xf32> to vector<8x128xf32>
    %5 = vector.extract_strided_slice %2 {offsets = [0, 256], sizes = [8, 128], strides = [1, 1]} : vector<8x384xf32> to vector<8x128xf32>
    %cst_3 = arith.constant dense<0.000000e+00> : vector<8x8xf32>
    %6 = tpu.matmul %3, %4, %cst_3 {dimension_numbers = #tpu.dot_dimension_numbers<[1], [1], [0], [0], [0, 0, 1, 0], [], []>} : vector<8x128xf32>, vector<8x128xf32>, vector<8x8xf32> -> vector<8x8xf32>
    %c0_4 = arith.constant 0 : index
    %c0_5 = arith.constant 0 : index
    %7 = vector.load %arg2[%c0_4, %c0_5] : memref<1x8xf32, #tpu.memory_space<vmem>>, vector<1x8xf32>
    %8 = vector.broadcast %7 : vector<1x8xf32> to vector<8x8xf32>
    %9 = arith.addf %6, %8 : vector<8x8xf32>
    %cst_6 = arith.constant dense<0xFF800000> : vector<8xf32>
    %10 = vector.multi_reduction <maximumf>, %9, %cst_6 [1] : vector<8x8xf32> to vector<8xf32>
    %11 = vector.shape_cast %10 : vector<8xf32> to vector<8x1xf32>
    %12 = vector.broadcast %11 : vector<8x1xf32> to vector<8x8xf32>
    %13 = arith.subf %9, %12 : vector<8x8xf32>
    %14 = math.exp %13 : vector<8x8xf32>
    %cst_7 = arith.constant dense<0.000000e+00> : vector<8xf32>
    %15 = vector.multi_reduction <add>, %14, %cst_7 [1] : vector<8x8xf32> to vector<8xf32>
    %16 = vector.shape_cast %15 : vector<8xf32> to vector<8x1xf32>
    %cst_8 = arith.constant dense<0.000000e+00> : vector<8x128xf32>
    %17 = tpu.matmul %14, %5, %cst_8 {dimension_numbers = #tpu.dot_dimension_numbers<[1], [0], [0], [1], [0, 0, 1, 1], [], []>} : vector<8x8xf32>, vector<8x128xf32>, vector<8x128xf32> -> vector<8x128xf32>
    %18 = vector.broadcast %16 : vector<8x1xf32> to vector<8x128xf32>
    %19 = arith.divf %17, %18 : vector<8x128xf32>
    %c0_9 = arith.constant 0 : index
    %c0_10 = arith.constant 0 : index
    %20 = vector.load %arg3[%c0_9, %c0_10] : memref<8x128xf32, #tpu.memory_space<vmem>>, vector<8x128xf32>
    tpu.vector_store %arg3[%c0_9, %c0_10], %19 {strides = array<i32>} : memref<8x128xf32, #tpu.memory_space<vmem>>, vector<8x128xf32>,
    return
  }
}

</mosaic_0001>

<llo_original>
// kernel: tpu_custom_call.1
$region0: #{tpu_custom_call.1}
  #allocation0 [shape = 'u32[]', space=smem, size = 0x4, offset = 0x4, fixed_abs, tag = 'smem constant byte address 0x4 - core index']
  #allocation1 [shape = 'u32[144,128]{1,0:T(1,128)}', space=vmem, size = 0x12000, scoped, tag = 'internal scratch']
  %s0 = inlined_call_operand.hbm [shape: f32[8,128], index: 0, kind: input, shape index: {}]
  %s1 = inlined_call_operand.hbm [shape: f32[128,384], index: 1, kind: input, shape index: {}]
  %s2 = inlined_call_operand.vmem [shape: f32[1,8], index: 2, kind: input, shape index: {}]
  %s3 = inlined_call_operand.hbm [shape: f32[8,128], index: 3, kind: output, shape index: {}]
  %s4 = sld [smem:[#allocation0]]
  $region30: #{tpu_custom_call.1} parent=0
    _
  %s6 = ssub.s32 1, %s4
  %s7 = scalar_select 0, %s6, %s4
  $region1: #{tpu_custom_call.1} parent=0
    #allocation2 [shape = 'u8[4096]{0}', space=vmem, size = 0x1000, scoped, tag = 'input window, operand 0, single buffered']
    #allocation3 [shape = 's32[1]{0}', space=sflag, size = 0x4, scoped, tag = 'scoped memory for tpu_custom_call.1']
    #allocation4 [shape = 's32[1]{0}', space=sflag, size = 0x4, scoped, tag = 'scoped memory for tpu_custom_call.1']
    #allocation5 [shape = 'u8[196608]{0}', space=vmem, size = 0x30000, scoped, tag = 'input window, operand 1, single buffered']
    #allocation6 [shape = 's32[1]{0}', space=sflag, size = 0x4, scoped, tag = 'scoped memory for tpu_custom_call.1']
    #allocation7 [shape = 'u8[4096]{0}', space=vmem, size = 0x1000, scoped, tag = 'output window, operand 0, single buffered']
    %8 = vsyncpa [#allocation3], 0
    %9 = vsyncpa [#allocation6], 0
    %10 = vsyncpa [#allocation4], 0
    // Predicated region
    $region2: #{tpu_custom_call.1} parent=1 // pred_check
      _
    $region3: #{tpu_custom_call.1} parent=1 // pred_check_branch
      %12 = sbr.rel (0) target = $region5
    $region4: #{tpu_custom_call.1} parent=1 // pred_region
      %s14 = ssub.s32 128, 128
      %15 = vsyncadd [#allocation3], %s14
      %s17 = sshll.u32 [#allocation2], 4
      %s18 = int_to_ptr.vmem [resolvable:$true] %s17
      %20 = dma.hbm_to_vmem [thread:$0]  %s0, 128, %s18, [#allocation3]
    $region5: #{tpu_custom_call.1} parent=1 // pred_fallthru
      _
    // Predicated region
    $region6: #{tpu_custom_call.1} parent=1 // pred_check
      _
    $region7: #{tpu_custom_call.1} parent=1 // pred_check_branch
      %22 = sbr.rel (0) target = $region9
    $region8: #{tpu_custom_call.1} parent=1 // pred_region
      %s24 = ssub.s32 6144, 6144
      %25 = vsyncadd [#allocation6], %s24
      %s26 = sshll.u32 [#allocation5], 4
      %s27 = int_to_ptr.vmem [resolvable:$true] %s26
      %32 = dma.hbm_to_vmem [thread:$0]  %s1, 6144, %s27, [#allocation6], 384, 384, 24
    $region9: #{tpu_custom_call.1} parent=1 // pred_fallthru
      _
    // Predicated region
    $region10: #{tpu_custom_call.1} parent=1 // pred_check
      _
    $region11: #{tpu_custom_call.1} parent=1 // pred_check_branch
      %34 = sbr.rel (0) target = $region13
    $region12: #{tpu_custom_call.1} parent=1 // pred_region
      _
    $region13: #{tpu_custom_call.1} parent=1 // pred_fallthru
      _
    // Predicated region
    $region14: #{tpu_custom_call.1} parent=1 // pred_check
      _
    $region15: #{tpu_custom_call.1} parent=1 // pred_check_branch
      %36 = sbr.rel (0) target = $region17
    $region16: #{tpu_custom_call.1} parent=1 // pred_region
      %37 = dma.done [#allocation3], 128
    $region17: #{tpu_custom_call.1} parent=1 // pred_fallthru
      _
    // Predicated region
    $region18: #{tpu_custom_call.1} parent=1 // pred_check
      _
    $region19: #{tpu_custom_call.1} parent=1 // pred_check_branch
      %39 = sbr.rel (0) target = $region21
    $region20: #{tpu_custom_call.1} parent=1 // pred_region
      %40 = dma.done [#allocation6], 6144
    $region21: #{tpu_custom_call.1} parent=1 // pred_fallthru
      _
    %v41 = vld [vmem:[#allocation2] sm:$0xff]
    %v42 = vld [vmem:[#allocation5] sm:$0xff]
    %v43 = vld [vmem:[#allocation5 + $0x8] sm:$0xff]
    %v44 = vld [vmem:[#allocation5 + $0x10] sm:$0xff]
    %v45 = vld [vmem:[#allocation5 + $0x18] sm:$0xff]
    %v46 = vld [vmem:[#allocation5 + $0x20] sm:$0xff]
    %v47 = vld [vmem:[#allocation5 + $0x28] sm:$0xff]
    %v48 = vld [vmem:[#allocation5 + $0x30] sm:$0xff]
    %v49 = vld [vmem:[#allocation5 + $0x38] sm:$0xff]
    %v50 = vld [vmem:[#allocation5 + $0x40] sm:$0xff]
    %v51 = vld [vmem:[#allocation5 + $0x48] sm:$0xff]
    %v52 = vld [vmem:[#allocation5 + $0x50] sm:$0xff]
    %v53 = vld [vmem:[#allocation5 + $0x58] sm:$0xff]
    %v54 = vld [vmem:[#allocation5 + $0x60] sm:$0xff]
    %v55 = vld [vmem:[#allocation5 + $0x68] sm:$0xff]
    %v56 = vld [vmem:[#allocation5 + $0x70] sm:$0xff]
    %v57 = vld [vmem:[#allocation5 + $0x78] sm:$0xff]
    %v58 = vld [vmem:[#allocation5 + $0x80] sm:$0xff]
    %v59 = vld [vmem:[#allocation5 + $0x88] sm:$0xff]
    %v60 = vld [vmem:[#allocation5 + $0x90] sm:$0xff]
    %v61 = vld [vmem:[#allocation5 + $0x98] sm:$0xff]
    %v62 = vld [vmem:[#allocation5 + $0xa0] sm:$0xff]
    %v63 = vld [vmem:[#allocation5 + $0xa8] sm:$0xff]
    %v64 = vld [vmem:[#allocation5 + $0xb0] sm:$0xff]
    %v65 = vld [vmem:[#allocation5 + $0xb8] sm:$0xff]
    %v66 = vld [vmem:[#allocation5 + $0xc0] sm:$0xff]
    %v67 = vld [vmem:[#allocation5 + $0xc8] sm:$0xff]
    %v68 = vld [vmem:[#allocation5 + $0xd0] sm:$0xff]
    %v69 = vld [vmem:[#allocation5 + $0xd8] sm:$0xff]
    %v70 = vld [vmem:[#allocation5 + $0xe0] sm:$0xff]
    %v71 = vld [vmem:[#allocation5 + $0xe8] sm:$0xff]
    %v72 = vld [vmem:[#allocation5 + $0xf0] sm:$0xff]
    %v73 = vld [vmem:[#allocation5 + $0xf8] sm:$0xff]
    %v74 = vld [vmem:[#allocation5 + $0x100] sm:$0xff]
    %v75 = vld [vmem:[#allocation5 + $0x108] sm:$0xff]
    %v76 = vld [vmem:[#allocation5 + $0x110] sm:$0xff]
    %v77 = vld [vmem:[#allocation5 + $0x118] sm:$0xff]
    %v78 = vld [vmem:[#allocation5 + $0x120] sm:$0xff]
    %v79 = vld [vmem:[#allocation5 + $0x128] sm:$0xff]
    %v80 = vld [vmem:[#allocation5 + $0x130] sm:$0xff]
    %v81 = vld [vmem:[#allocation5 + $0x138] sm:$0xff]
    %v82 = vld [vmem:[#allocation5 + $0x140] sm:$0xff]
    %v83 = vld [vmem:[#allocation5 + $0x148] sm:$0xff]
    %v84 = vld [vmem:[#allocation5 + $0x150] sm:$0xff]
    %v85 = vld [vmem:[#allocation5 + $0x158] sm:$0xff]
    %v86 = vld [vmem:[#allocation5 + $0x160] sm:$0xff]
    %v87 = vld [vmem:[#allocation5 + $0x168] sm:$0xff]
    %v88 = vld [vmem:[#allocation5 + $0x170] sm:$0xff]
    %v89 = vld [vmem:[#allocation5 + $0x178] sm:$0xff]
    %90 = vmatprep.subr.mxu0 %v88
    %91 = vmatpush1.msra.mxu0 %v87
    %92 = vmatprep.subr.mxu0 %v85
    %93 = vmatpush1.msra.mxu0 %v84
    %94 = vmatprep.subr.mxu0 %v82
    %95 = vmatpush1.msra.mxu0 %v81
    %96 = vmatprep.subr.mxu0 %v79
    %97 = vmatpush1.msra.mxu0 %v78
    %98 = vmatprep.subr.mxu0 %v76
    %99 = vmatpush1.msra.mxu0 %v75
    %100 = vmatprep.subr.mxu0 %v73
    %101 = vmatpush1.msra.mxu0 %v72
    %102 = vmatprep.subr.mxu0 %v70
    %103 = vmatpush1.msra.mxu0 %v69
    %104 = vmatprep.subr.mxu0 %v67
    %105 = vmatpush1.msra.mxu0 %v66
    %106 = vmatprep.subr.mxu0 %v64
    %107 = vmatpush1.msra.mxu0 %v63
    %108 = vmatprep.subr.mxu0 %v61
    %109 = vmatpush1.msra.mxu0 %v60
    %110 = vmatprep.subr.mxu0 %v58
    %111 = vmatpush1.msra.mxu0 %v57
    %112 = vmatprep.subr.mxu0 %v55
    %113 = vmatpush1.msra.mxu0 %v54
    %114 = vmatprep.subr.mxu0 %v52
    %115 = vmatpush1.msra.mxu0 %v51
    %116 = vmatprep.subr.mxu0 %v49
    %117 = vmatpush1.msra.mxu0 %v48
    %118 = vmatprep.subr.mxu0 %v46
    %119 = vmatpush1.msra.mxu0 %v45
    %120 = vmatprep.subr.mxu0 %v43
    %121 = vmatpush1.msra.mxu0 %v42
    %122 = vmatprep.subr.mxu0 0.0
    %123 = vmatpush2.msra.mxu0 0.0
    %124 = vmatprep.subr.mxu0 0.0
    %125 = vmatpush2.msra.mxu0 0.0
    %126 = vmatprep.subr.mxu0 0.0
    %127 = vmatpush2.msra.mxu0 0.0
    %128 = vmatprep.subr.mxu0 0.0
    %129 = vmatpush2.msra.mxu0 0.0
    %130 = vmatprep.subr.mxu0 0.0
    %131 = vmatpush2.msra.mxu0 0.0
    %132 = vmatprep.subr.mxu0 0.0
    %133 = vmatpush2.msra.mxu0 0.0
    %134 = vmatprep.subr.mxu0 0.0
    %135 = vmatpush2.msra.mxu0 0.0
    %136 = vmatprep.subr.mxu0 0.0
    %137 = vmatpush2.msra.mxu0 0.0
    %138 = vmatprep.subr.mxu0 0.0
    %139 = vmatpush2.msra.mxu0 0.0
    %140 = vmatprep.subr.mxu0 0.0
    %141 = vmatpush2.msra.mxu0 0.0
    %142 = vmatprep.subr.mxu0 0.0
    %143 = vmatpush2.msra.mxu0 0.0
    %144 = vmatprep.subr.mxu0 0.0
    %145 = vmatpush2.msra.mxu0 0.0
    %146 = vmatprep.subr.mxu0 0.0
    %147 = vmatpush2.msra.mxu0 0.0
    %148 = vmatprep.subr.mxu0 0.0
    %149 = vmatpush2.msra.mxu0 0.0
    %150 = vmatprep.subr.mxu0 0.0
    %151 = vmatpush2.msra.mxu0 0.0
    %152 = vmatprep.subr.mxu0 0.0
    %153 = vmatpush2.msra.mxu0 0.0
    %154 = vmatprep.mubr.f32.mxu0 0.0
    %155 = vmatmul.mubr.f32.gmra.mxu0 %v41
    %v156 = vpop.f32.mrf.mxu0
    %v157 = vadd.f32 0.0, %v156
    %v158 = vpop.f32.mrf.mxu0
    %v159 = vadd.f32 0.0, %v158
    %160 = vdwg.mxu0
    %161 = vmatprep.subr.mxu0 0.0
    %162 = vmatpush1.msra.mxu0 %v89
    %163 = vmatprep.subr.mxu0 0.0
    %164 = vmatpush1.msra.mxu0 %v86
    %165 = vmatprep.subr.mxu0 0.0
    %166 = vmatpush1.msra.mxu0 %v83
    %167 = vmatprep.subr.mxu0 0.0
    %168 = vmatpush1.msra.mxu0 %v80
    %169 = vmatprep.subr.mxu0 0.0
    %170 = vmatpush1.msra.mxu0 %v77
    %171 = vmatprep.subr.mxu0 0.0
    %172 = vmatpush1.msra.mxu0 %v74
    %173 = vmatprep.subr.mxu0 0.0
    %174 = vmatpush1.msra.mxu0 %v71
    %175 = vmatprep.subr.mxu0 0.0
    %176 = vmatpush1.msra.mxu0 %v68
    %177 = vmatprep.subr.mxu0 0.0
    %178 = vmatpush1.msra.mxu0 %v65
    %179 = vmatprep.subr.mxu0 0.0
    %180 = vmatpush1.msra.mxu0 %v62
    %181 = vmatprep.subr.mxu0 0.0
    %182 = vmatpush1.msra.mxu0 %v59
    %183 = vmatprep.subr.mxu0 0.0
    %184 = vmatpush1.msra.mxu0 %v56
    %185 = vmatprep.subr.mxu0 0.0
    %186 = vmatpush1.msra.mxu0 %v53
    %187 = vmatprep.subr.mxu0 0.0
    %188 = vmatpush1.msra.mxu0 %v50
    %189 = vmatprep.subr.mxu0 0.0
    %190 = vmatpush1.msra.mxu0 %v47
    %191 = vmatprep.subr.mxu0 0.0
    %192 = vmatpush1.msra.mxu0 %v44
    %193 = vmatprep.subr.mxu0 0.0
    %194 = vmatpush2.msra.mxu0 0.0
    %195 = vmatprep.subr.mxu0 0.0
    %196 = vmatpush2.msra.mxu0 0.0
    %197 = vmatprep.subr.mxu0 0.0
    %198 = vmatpush2.msra.mxu0 0.0
    %199 = vmatprep.subr.mxu0 0.0
    %200 = vmatpush2.msra.mxu0 0.0
    %201 = vmatprep.subr.mxu0 0.0
    %202 = vmatpush2.msra.mxu0 0.0
    %203 = vmatprep.subr.mxu0 0.0
    %204 = vmatpush2.msra.mxu0 0.0
    %205 = vmatprep.subr.mxu0 0.0
    %206 = vmatpush2.msra.mxu0 0.0
    %207 = vmatprep.subr.mxu0 0.0
    %208 = vmatpush2.msra.mxu0 0.0
    %209 = vmatprep.subr.mxu0 0.0
    %210 = vmatpush2.msra.mxu0 0.0
    %211 = vmatprep.subr.mxu0 0.0
    %212 = vmatpush2.msra.mxu0 0.0
    %213 = vmatprep.subr.mxu0 0.0
    %214 = vmatpush2.msra.mxu0 0.0
    %215 = vmatprep.subr.mxu0 0.0
    %216 = vmatpush2.msra.mxu0 0.0
    %217 = vmatprep.subr.mxu0 0.0
    %218 = vmatpush2.msra.mxu0 0.0
    %219 = vmatprep.subr.mxu0 0.0
    %220 = vmatpush2.msra.mxu0 0.0
    %221 = vmatprep.subr.mxu0 0.0
    %222 = vmatpush2.msra.mxu0 0.0
    %223 = vmatprep.subr.mxu0 0.0
    %224 = vmatpush2.msra.mxu0 0.0
    %225 = vmatprep.mubr.f32.mxu0 0.0
    %226 = vmatmul.mubr.f32.gmra.mxu0 %v41
    %v227 = vpop.f32.mrf.mxu0
    %v228 = vadd.f32 0.0, %v227
    %v229 = vpop.f32.mrf.mxu0
    %230 = vdwg.mxu0
    %v231 = vld [vmem:[%s2] sm:$0x1]
    %v233 = vlaneseq
    %v234 = vshrl.u32 %v233, 7
    %v235 = vsub.s32 0, %v234
    %v236 = vrot.slane %v231, %v235
    %238 = vmatprep.subr.mxu0 0.0
    %239 = vmatpush1.xpose.msra.mxu0 0.0
    %240 = vmatprep.subr.mxu0 0.0
    %241 = vmatpush1.xpose.msra.mxu0 0.0
    %242 = vmatprep.subr.mxu0 0.0
    %243 = vmatpush1.xpose.msra.mxu0 0.0
    %244 = vmatprep.subr.mxu0 0.0
    %245 = vmatpush1.xpose.msra.mxu0 0.0
    %246 = vmatprep.subr.mxu0 0.0
    %247 = vmatpush1.xpose.msra.mxu0 0.0
    %248 = vmatprep.subr.mxu0 0.0
    %249 = vmatpush1.xpose.msra.mxu0 0.0
    %250 = vmatprep.subr.mxu0 0.0
    %251 = vmatpush1.xpose.msra.mxu0 0.0
    %252 = vmatprep.subr.mxu0 0.0
    %253 = vmatpush1.xpose.msra.mxu0 0.0
    %254 = vmatprep.subr.mxu0 0.0
    %255 = vmatpush1.xpose.msra.mxu0 0.0
    %256 = vmatprep.subr.mxu0 0.0
    %257 = vmatpush1.xpose.msra.mxu0 0.0
    %258 = vmatprep.subr.mxu0 0.0
    %259 = vmatpush1.xpose.msra.mxu0 0.0
    %260 = vmatprep.subr.mxu0 0.0
    %261 = vmatpush1.xpose.msra.mxu0 0.0
    %262 = vmatprep.subr.mxu0 0.0
    %263 = vmatpush1.xpose.msra.mxu0 0.0
    %264 = vmatprep.subr.mxu0 0.0
    %265 = vmatpush1.xpose.msra.mxu0 0.0
    %266 = vmatprep.subr.mxu0 0.0
    %267 = vmatpush1.xpose.msra.mxu0 0.0
    %268 = vmatprep.subr.mxu0 0.0
    %269 = vmatpush1.xpose.msra.mxu0 %v159
    %270 = vmatprep.subr.mxu0 0.0
    %271 = vmatpush2.xpose.msra.mxu0 0.0
    %272 = vmatprep.subr.mxu0 0.0
    %273 = vmatpush2.xpose.msra.mxu0 0.0
    %274 = vmatprep.subr.mxu0 0.0
    %275 = vmatpush2.xpose.msra.mxu0 0.0
    %276 = vmatprep.subr.mxu0 0.0
    %277 = vmatpush2.xpose.msra.mxu0 0.0
    %278 = vmatprep.subr.mxu0 0.0
    %279 = vmatpush2.xpose.msra.mxu0 0.0
    %280 = vmatprep.subr.mxu0 0.0
    %281 = vmatpush2.xpose.msra.mxu0 0.0
    %282 = vmatprep.subr.mxu0 0.0
    %283 = vmatpush2.xpose.msra.mxu0 0.0
    %284 = vmatprep.subr.mxu0 0.0
    %285 = vmatpush2.xpose.msra.mxu0 0.0
    %286 = vmatprep.subr.mxu0 0.0
    %287 = vmatpush2.xpose.msra.mxu0 0.0
    %288 = vmatprep.subr.mxu0 0.0
    %289 = vmatpush2.xpose.msra.mxu0 0.0
    %290 = vmatprep.subr.mxu0 0.0
    %291 = vmatpush2.xpose.msra.mxu0 0.0
    %292 = vmatprep.subr.mxu0 0.0
    %293 = vmatpush2.xpose.msra.mxu0 0.0
    %294 = vmatprep.subr.mxu0 0.0
    %295 = vmatpush2.xpose.msra.mxu0 0.0
    %296 = vmatprep.subr.mxu0 0.0
    %297 = vmatpush2.xpose.msra.mxu0 0.0
    %298 = vmatprep.subr.mxu0 0.0
    %299 = vmatpush2.xpose.msra.mxu0 0.0
    %300 = vmatprep.subr.mxu0 0.0
    %301 = vmatpush2.xpose.msra.mxu0 0.0
    %302 = vmatprep.mubr.f32.mxu0 0.0
    %303 = vmatmul.mubr.f32.gmra.mxu0 %v157
    %v304 = vpop.f32.mrf.mxu0
    %v305 = vadd.f32 %v236, %v304
    %v306 = vpop.f32.mrf.mxu0
    %307 = vdwg.mxu0
    %vm308 = vcmask 64512
    %v309 = vsel %vm308, %v305, -inf
    %310 = vmax.xlane.f32.xlu0 %v309
    %v311 = vpop.xlane.xlu0 %310
    %v312 = vsub.f32 %v305, %v311
    %v313 = vmul.f32 %v312, 1.442695
    %v314 = vpow.pop %v313
    %v315 = vsel %vm308, %v314, 0.0
    %316 = vadd.xlane.f32.xlu0 %v315
    %v317 = vpop.xlane.xlu0 %316
    %v319 = vsel %vm308, %v314, 0
    %321 = vmatprep.subr.mxu0 0.0
    %322 = vmatpush1.msra.mxu0 0.0
    %323 = vmatprep.subr.mxu0 0.0
    %324 = vmatpush1.msra.mxu0 0.0
    %325 = vmatprep.subr.mxu0 0.0
    %326 = vmatpush1.msra.mxu0 0.0
    %327 = vmatprep.subr.mxu0 0.0
    %328 = vmatpush1.msra.mxu0 0.0
    %329 = vmatprep.subr.mxu0 0.0
    %330 = vmatpush1.msra.mxu0 0.0
    %331 = vmatprep.subr.mxu0 0.0
    %332 = vmatpush1.msra.mxu0 0.0
    %333 = vmatprep.subr.mxu0 0.0
    %334 = vmatpush1.msra.mxu0 0.0
    %335 = vmatprep.subr.mxu0 0.0
    %336 = vmatpush1.msra.mxu0 0.0
    %337 = vmatprep.subr.mxu0 0.0
    %338 = vmatpush1.msra.mxu0 0.0
    %339 = vmatprep.subr.mxu0 0.0
    %340 = vmatpush1.msra.mxu0 0.0
    %341 = vmatprep.subr.mxu0 0.0
    %342 = vmatpush1.msra.mxu0 0.0
    %343 = vmatprep.subr.mxu0 0.0
    %344 = vmatpush1.msra.mxu0 0.0
    %345 = vmatprep.subr.mxu0 0.0
    %346 = vmatpush1.msra.mxu0 0.0
    %347 = vmatprep.subr.mxu0 0.0
    %348 = vmatpush1.msra.mxu0 0.0
    %349 = vmatprep.subr.mxu0 0.0
    %350 = vmatpush1.msra.mxu0 0.0
    %351 = vmatprep.subr.mxu0 0.0
    %352 = vmatpush1.msra.mxu0 %v228
    %353 = vmatprep.subr.mxu0 0.0
    %354 = vmatpush2.msra.mxu0 0.0
    %355 = vmatprep.subr.mxu0 0.0
    %356 = vmatpush2.msra.mxu0 0.0
    %357 = vmatprep.subr.mxu0 0.0
    %358 = vmatpush2.msra.mxu0 0.0
    %359 = vmatprep.subr.mxu0 0.0
    %360 = vmatpush2.msra.mxu0 0.0
    %361 = vmatprep.subr.mxu0 0.0
    %362 = vmatpush2.msra.mxu0 0.0
    %363 = vmatprep.subr.mxu0 0.0
    %364 = vmatpush2.msra.mxu0 0.0
    %365 = vmatprep.subr.mxu0 0.0
    %366 = vmatpush2.msra.mxu0 0.0
    %367 = vmatprep.subr.mxu0 0.0
    %368 = vmatpush2.msra.mxu0 0.0
    %369 = vmatprep.subr.mxu0 0.0
    %370 = vmatpush2.msra.mxu0 0.0
    %371 = vmatprep.subr.mxu0 0.0
    %372 = vmatpush2.msra.mxu0 0.0
    %373 = vmatprep.subr.mxu0 0.0
    %374 = vmatpush2.msra.mxu0 0.0
    %375 = vmatprep.subr.mxu0 0.0
    %376 = vmatpush2.msra.mxu0 0.0
    %377 = vmatprep.subr.mxu0 0.0
    %378 = vmatpush2.msra.mxu0 0.0
    %379 = vmatprep.subr.mxu0 0.0
    %380 = vmatpush2.msra.mxu0 0.0
    %381 = vmatprep.subr.mxu0 0.0
    %382 = vmatpush2.msra.mxu0 0.0
    %383 = vmatprep.subr.mxu0 0.0
    %384 = vmatpush2.msra.mxu0 0.0
    %385 = vmatprep.mubr.f32.mxu0 0.0
    %386 = vmatmul.mubr.f32.gmra.mxu0 %v319
    %v387 = vpop.f32.mrf.mxu0
    %v388 = vadd.f32 0.0, %v387
    %v389 = vpop.f32.mrf.mxu0
    %390 = vdwg.mxu0
    %v391 = vrcp.pop %v317
    %v392 = vmul.f32 %v388, %v391
    %393 = vst [vmem:[#allocation7] sm:$0xff] %v392
    // Predicated region
    $region22: #{tpu_custom_call.1} parent=1 // pred_check
      _
    $region23: #{tpu_custom_call.1} parent=1 // pred_check_branch
      %395 = sbr.rel (0) target = $region25
    $region24: #{tpu_custom_call.1} parent=1 // pred_region
      %s397 = ssub.s32 128, 128
      %398 = vsyncadd [#allocation4], %s397
      %s400 = sshll.u32 [#allocation7], 4
      %s401 = int_to_ptr.vmem [resolvable:$true] %s400
      %403 = dma.vmem_to_hbm [thread:$0]  %s401, 128, %s3, [#allocation4]
    $region25: #{tpu_custom_call.1} parent=1 // pred_fallthru
      _
    // Predicated region
    $region26: #{tpu_custom_call.1} parent=1 // pred_check
      _
    $region27: #{tpu_custom_call.1} parent=1 // pred_check_branch
      %405 = sbr.rel (0) target = $region29
    $region28: #{tpu_custom_call.1} parent=1 // pred_region
      %406 = dma.done [#allocation4], 128
    $region29: #{tpu_custom_call.1} parent=1 // pred_fallthru
      _
    %407 = vsyncpa [#allocation3], 1
    %408 = vsyncpa [#allocation6], 1
    %409 = vsyncpa [#allocation4], 1

</llo_original>
